<compile_context>
chip_gen: v7x
topology: tpu7x:2x2x1
jax: 0.10.0
libtpu: 0.0.40
codegen_flags: <defaults>
</compile_context>

<pallas_src>
import jax
import jax.numpy as jnp
from jax.experimental import pallas as pl
from jax.experimental.pallas import tpu as pltpu

INPUT_DIM = 256     # flattened feature dim of the wrapped AE
HIDDEN_DIM = 32     # logical hidden size of the synthetic vanilla AE
HIDDEN_PAD = 128    # lane-full padded hidden size (exact, see header)
TM_MAX = 512        # max row tile: ~85% HBM roofline, fits all generations


def _ae_kernel(x_ref, we_ref, be_ref, wd_ref, bd_ref, out_ref):
    # x_ref:  (TM, D)   we_ref: (D, Hp)   be_ref: (1, Hp)
    # wd_ref: (Hp, D)   bd_ref: (1, D)    out_ref: (TM, D)
    x = x_ref[...]
    h = jnp.dot(x, we_ref[...], preferred_element_type=jnp.float32) + be_ref[...]
    h = jnp.maximum(h, 0.0)                                   # encoder ReLU
    r = jnp.dot(h.astype(wd_ref.dtype), wd_ref[...],
                preferred_element_type=jnp.float32) + bd_ref[...]
    # sigmoid(r) = 1 / (1 + exp(-r)): EUP exp + EUP-path reciprocal, no VALU div.
    out_ref[...] = pl.reciprocal(1.0 + jnp.exp(-r), approx=False).astype(out_ref.dtype)


def ae_wrapper_forward(x, w_enc, b_enc, w_dec, b_dec, compute_dtype=None):
    """AEWrapper.forward: flatten to (-1, INPUT_DIM), return reconstruction only.

    compute_dtype: optionally cast x / weights (e.g. jnp.bfloat16 on v6e/v7x);
    accumulation stays f32. Default None keeps the input dtype exactly.
    """
    if x.ndim != 2 or x.shape[1] != INPUT_DIM:
        x = x.reshape(-1, INPUT_DIM)          # torch .view(-1, input_dim)
    n = x.shape[0]
    out_dtype = x.dtype

    # One-time parameter prep (outside the kernel): pad hidden 32 -> 128 with zeros.
    hp = HIDDEN_PAD - w_enc.shape[1]
    we = jnp.pad(w_enc, ((0, 0), (0, hp)))
    be = jnp.pad(b_enc.reshape(1, -1), ((0, 0), (0, hp)))
    wd = jnp.pad(w_dec, ((0, hp), (0, 0)))
    bd = b_dec.reshape(1, -1)

    if compute_dtype is not None:
        x, we, wd = x.astype(compute_dtype), we.astype(compute_dtype), wd.astype(compute_dtype)

    # Row tiling: TM is 8-aligned, capped at TM_MAX; pad N up to a tile multiple.
    tm = min(TM_MAX, ((n + 7) // 8) * 8)
    n_padded = pl.cdiv(n, tm) * tm
    if n_padded != n:
        x = jnp.pad(x, ((0, n_padded - n), (0, 0)))
    grid = (n_padded // tm,)

    out = pl.pallas_call(
        _ae_kernel,
        out_shape=jax.ShapeDtypeStruct((n_padded, INPUT_DIM), out_dtype),
        grid=grid,
        in_specs=[
            pl.BlockSpec((tm, INPUT_DIM), lambda i: (i, 0)),            # x: pipelined rows
            pl.BlockSpec((INPUT_DIM, HIDDEN_PAD), lambda i: (0, 0)),    # W_enc: resident
            pl.BlockSpec((1, HIDDEN_PAD), lambda i: (0, 0)),            # b_enc: resident
            pl.BlockSpec((HIDDEN_PAD, INPUT_DIM), lambda i: (0, 0)),    # W_dec: resident
            pl.BlockSpec((1, INPUT_DIM), lambda i: (0, 0)),             # b_dec: resident
        ],
        out_specs=pl.BlockSpec((tm, INPUT_DIM), lambda i: (i, 0)),
        compiler_params=pltpu.CompilerParams(dimension_semantics=("parallel",)),
    )(x, we, be, wd, bd)

    return out[:n] if n_padded != n else out


def _reference(x, w_enc, b_enc, w_dec, b_dec):
    x2 = x.reshape(-1, INPUT_DIM)
    h = jnp.maximum(x2 @ w_enc + b_enc, 0.0)
    return jax.nn.sigmoid(h @ w_dec + b_dec)


if __name__ == "__main__":
    key = jax.random.PRNGKey(0)
    k_x, k_we, k_be, k_wd, k_bd = jax.random.split(key, 5)

    # PyTorch-style NCHW input: (B=2, C=4, H=16, W=16) -> flattens to (8, 256)
    x = jax.random.normal(k_x, (2, 4, 16, 16), dtype=jnp.float32)

    # Deterministic synthetic vanilla-autoencoder parameters
    w_enc = jax.random.normal(k_we, (INPUT_DIM, HIDDEN_DIM), dtype=jnp.float32) * 0.05
    b_enc = jax.random.normal(k_be, (1, HIDDEN_DIM), dtype=jnp.float32) * 0.01
    w_dec = jax.random.normal(k_wd, (HIDDEN_DIM, INPUT_DIM), dtype=jnp.float32) * 0.05
    b_dec = jax.random.normal(k_bd, (1, INPUT_DIM), dtype=jnp.float32) * 0.01

    out = jax.block_until_ready(ae_wrapper_forward(x, w_enc, b_enc, w_dec, b_dec))

    ref = _reference(x, w_enc, b_enc, w_dec, b_dec)
    assert out.shape == (8, INPUT_DIM), out.shape
    assert out.dtype == x.dtype, out.dtype
    assert jnp.allclose(out, ref, atol=1e-5, rtol=1e-5), "mismatch vs reference"

    print("KERNEL_OK")
</pallas_src>

<mosaic_0001>
module attributes {stable_mosaic.version = 11 : i64} {
  func.func @_ae_kernel(%arg0: i32, %arg1: memref<8x256xf32, #tpu.memory_space<vmem>>, %arg2: memref<256x128xf32, #tpu.memory_space<vmem>>, %arg3: memref<1x128xf32, #tpu.memory_space<vmem>>, %arg4: memref<128x256xf32, #tpu.memory_space<vmem>>, %arg5: memref<1x256xf32, #tpu.memory_space<vmem>>, %arg6: memref<8x256xf32, #tpu.memory_space<vmem>>) attributes {dimension_semantics = [#tpu.dimension_semantics<parallel>], iteration_bounds = array<i64: 1>, scalar_prefetch = 0 : i64, scratch_operands = 0 : i64, tpu.core_type = #tpu.core_type<tc>, window_params = [{transform_indices = @transform_0, window_bounds = array<i64: 8, 256>}, {pipeline_mode = #tpu.pipeline_mode<synchronous>, transform_indices = @transform_1, window_bounds = array<i64: 256, 128>}, {pipeline_mode = #tpu.pipeline_mode<synchronous>, transform_indices = @transform_2, window_bounds = array<i64: 1, 128>}, {pipeline_mode = #tpu.pipeline_mode<synchronous>, transform_indices = @transform_3, window_bounds = array<i64: 128, 256>}, {pipeline_mode = #tpu.pipeline_mode<synchronous>, transform_indices = @transform_4, window_bounds = array<i64: 1, 256>}, {transform_indices = @transform_5, window_bounds = array<i64: 8, 256>}]} {
    %c0 = arith.constant 0 : index
    %c0_0 = arith.constant 0 : index
    %0 = vector.load %arg1[%c0, %c0_0] : memref<8x256xf32, #tpu.memory_space<vmem>>, vector<8x256xf32>
    %c0_1 = arith.constant 0 : index
    %c0_2 = arith.constant 0 : index
    %1 = vector.load %arg2[%c0_1, %c0_2] : memref<256x128xf32, #tpu.memory_space<vmem>>, vector<256x128xf32>
    %cst = arith.constant dense<0.000000e+00> : vector<8x128xf32>
    %2 = tpu.matmul %0, %1, %cst {dimension_numbers = #tpu.dot_dimension_numbers<[1], [0], [0], [1], [0, 0, 1, 1], [], []>} : vector<8x256xf32>, vector<256x128xf32>, vector<8x128xf32> -> vector<8x128xf32>
    %c0_3 = arith.constant 0 : index
    %c0_4 = arith.constant 0 : index
    %3 = vector.load %arg3[%c0_3, %c0_4] : memref<1x128xf32, #tpu.memory_space<vmem>>, vector<1x128xf32>
    %4 = vector.broadcast %3 : vector<1x128xf32> to vector<8x128xf32>
    %5 = arith.addf %2, %4 : vector<8x128xf32>
    %cst_5 = arith.constant 0.000000e+00 : f32
    %6 = vector.broadcast %cst_5 : f32 to vector<8x128xf32>
    %7 = arith.maximumf %5, %6 : vector<8x128xf32>
    %c0_6 = arith.constant 0 : index
    %c0_7 = arith.constant 0 : index
    %8 = vector.load %arg4[%c0_6, %c0_7] : memref<128x256xf32, #tpu.memory_space<vmem>>, vector<128x256xf32>
    %cst_8 = arith.constant dense<0.000000e+00> : vector<8x256xf32>
    %9 = tpu.matmul %7, %8, %cst_8 {dimension_numbers = #tpu.dot_dimension_numbers<[1], [0], [0], [1], [0, 0, 1, 1], [], []>} : vector<8x128xf32>, vector<128x256xf32>, vector<8x256xf32> -> vector<8x256xf32>
    %c0_9 = arith.constant 0 : index
    %c0_10 = arith.constant 0 : index
    %10 = vector.load %arg5[%c0_9, %c0_10] : memref<1x256xf32, #tpu.memory_space<vmem>>, vector<1x256xf32>
    %11 = vector.broadcast %10 : vector<1x256xf32> to vector<8x256xf32>
    %12 = arith.addf %9, %11 : vector<8x256xf32>
    %cst_11 = arith.constant 0.000000e+00 : f32
    %13 = vector.broadcast %cst_11 : f32 to vector<8x256xf32>
    %14 = arith.subf %13, %12 : vector<8x256xf32>
    %15 = math.exp %14 : vector<8x256xf32>
    %cst_12 = arith.constant 1.000000e+00 : f32
    %16 = vector.broadcast %cst_12 : f32 to vector<8x256xf32>
    %17 = arith.addf %16, %15 : vector<8x256xf32>
    %18 = tpu.reciprocal %17 : vector<8x256xf32> -> vector<8x256xf32>
    %c0_13 = arith.constant 0 : index
    %c0_14 = arith.constant 0 : index
    %19 = vector.load %arg6[%c0_13, %c0_14] : memref<8x256xf32, #tpu.memory_space<vmem>>, vector<8x256xf32>
    tpu.vector_store %arg6[%c0_13, %c0_14], %18 {strides = array<i32>} : memref<8x256xf32, #tpu.memory_space<vmem>>, vector<8x256xf32>,
    return
  }
  func.func @transform_0(%arg0: i32) -> (i32, i32) {
    %c0_i32 = arith.constant 0 : i32
    %c0_i32_0 = arith.constant 0 : i32
    return %arg0, %c0_i32 : i32, i32
  }
  func.func @transform_1(%arg0: i32) -> (i32, i32) {
    %c0_i32 = arith.constant 0 : i32
    %c0_i32_0 = arith.constant 0 : i32
    %c0_i32_1 = arith.constant 0 : i32
    return %c0_i32, %c0_i32_0 : i32, i32
  }
  func.func @transform_2(%arg0: i32) -> (i32, i32) {
    %c0_i32 = arith.constant 0 : i32
    %c0_i32_0 = arith.constant 0 : i32
    %c0_i32_1 = arith.constant 0 : i32
    return %c0_i32, %c0_i32_0 : i32, i32
  }
  func.func @transform_3(%arg0: i32) -> (i32, i32) {
    %c0_i32 = arith.constant 0 : i32
    %c0_i32_0 = arith.constant 0 : i32
    %c0_i32_1 = arith.constant 0 : i32
    return %c0_i32, %c0_i32_0 : i32, i32
  }
  func.func @transform_4(%arg0: i32) -> (i32, i32) {
    %c0_i32 = arith.constant 0 : i32
    %c0_i32_0 = arith.constant 0 : i32
    %c0_i32_1 = arith.constant 0 : i32
    return %c0_i32, %c0_i32_0 : i32, i32
  }
  func.func @transform_5(%arg0: i32) -> (i32, i32) {
    %c0_i32 = arith.constant 0 : i32
    %c0_i32_0 = arith.constant 0 : i32
    return %arg0, %c0_i32 : i32, i32
  }
}

</mosaic_0001>

<llo_original>
// kernel: tpu_custom_call.1
$region0: #{tpu_custom_call.1}
  #allocation0 [shape = 'u32[]', space=smem, size = 0x4, offset = 0x4, fixed_abs, tag = 'smem constant byte address 0x4 - core index']
  #allocation1 [shape = 'u32[144,128]{1,0:T(1,128)}', space=vmem, size = 0x12000, scoped, tag = 'internal scratch']
  %s0 = inlined_call_operand.hbm [shape: f32[8,256], index: 0, kind: input, shape index: {}]
  %s1 = inlined_call_operand.hbm [shape: f32[256,128], index: 1, kind: input, shape index: {}]
  %s2 = inlined_call_operand.vmem [shape: f32[1,128], index: 2, kind: input, shape index: {}]
  %s3 = inlined_call_operand.hbm [shape: f32[128,256], index: 3, kind: input, shape index: {}]
  %s4 = inlined_call_operand.vmem [shape: f32[1,256], index: 4, kind: input, shape index: {}]
  %s5 = inlined_call_operand.hbm [shape: f32[8,256], index: 5, kind: output, shape index: {}]
  %s6 = sld [smem:[#allocation0]]
  $region42: #{tpu_custom_call.1} parent=0
    _
  %s8 = ssub.s32 1, %s6
  %s9 = scalar_select 0, %s8, %s6
  $region1: #{tpu_custom_call.1} parent=0
    #allocation2 [shape = 'u8[8192]{0}', space=vmem, size = 0x2000, scoped, tag = 'input window, operand 0, single buffered']
    #allocation3 [shape = 's32[1]{0}', space=sflag, size = 0x4, scoped, tag = 'scoped memory for tpu_custom_call.1']
    #allocation4 [shape = 's32[1]{0}', space=sflag, size = 0x4, scoped, tag = 'scoped memory for tpu_custom_call.1']
    #allocation5 [shape = 'u8[131072]{0}', space=vmem, size = 0x20000, scoped, tag = 'input window, operand 1, single buffered']
    #allocation6 [shape = 's32[1]{0}', space=sflag, size = 0x4, scoped, tag = 'scoped memory for tpu_custom_call.1']
    #allocation7 [shape = 'u8[131072]{0}', space=vmem, size = 0x20000, scoped, tag = 'input window, operand 3, single buffered']
    #allocation8 [shape = 'u8[8192]{0}', space=vmem, size = 0x2000, scoped, tag = 'output window, operand 0, single buffered']
    %10 = vsyncpa [#allocation3], 0
    %11 = vsyncpa [#allocation6], 0
    %12 = vsyncpa [#allocation4], 0
    // Predicated region
    $region2: #{tpu_custom_call.1} parent=1 // pred_check
      _
    $region3: #{tpu_custom_call.1} parent=1 // pred_check_branch
      %14 = sbr.rel (0) target = $region5
    $region4: #{tpu_custom_call.1} parent=1 // pred_region
      %s16 = ssub.s32 256, 256
      %17 = vsyncadd [#allocation3], %s16
      %s19 = sshll.u32 [#allocation2], 4
      %s20 = int_to_ptr.vmem [resolvable:$true] %s19
      %22 = dma.hbm_to_vmem [thread:$0]  %s0, 256, %s20, [#allocation3]
    $region5: #{tpu_custom_call.1} parent=1 // pred_fallthru
      _
    // Predicated region
    $region6: #{tpu_custom_call.1} parent=1 // pred_check
      _
    $region7: #{tpu_custom_call.1} parent=1 // pred_check_branch
      %24 = sbr.rel (0) target = $region9
    $region8: #{tpu_custom_call.1} parent=1 // pred_region
      %s26 = ssub.s32 4096, 4096
      %27 = vsyncadd [#allocation6], %s26
      %s28 = sshll.u32 [#allocation5], 4
      %s29 = int_to_ptr.vmem [resolvable:$true] %s28
      %34 = dma.hbm_to_vmem [thread:$0]  %s1, 4096, %s29, [#allocation6], 128, 128, 8
    $region9: #{tpu_custom_call.1} parent=1 // pred_fallthru
      _
    // Predicated region
    $region10: #{tpu_custom_call.1} parent=1 // pred_check
      _
    $region11: #{tpu_custom_call.1} parent=1 // pred_check_branch
      %36 = sbr.rel (0) target = $region13
    $region12: #{tpu_custom_call.1} parent=1 // pred_region
      _
    $region13: #{tpu_custom_call.1} parent=1 // pred_fallthru
      _
    // Predicated region
    $region14: #{tpu_custom_call.1} parent=1 // pred_check
      _
    $region15: #{tpu_custom_call.1} parent=1 // pred_check_branch
      %38 = sbr.rel (0) target = $region17
    $region16: #{tpu_custom_call.1} parent=1 // pred_region
      %s40 = ssub.s32 4096, 4096
      %41 = vsyncadd [#allocation6], %s40
      %s42 = sshll.u32 [#allocation7], 4
      %s43 = int_to_ptr.vmem [resolvable:$true] %s42
      %48 = dma.hbm_to_vmem [thread:$0]  %s3, 4096, %s43, [#allocation6], 256, 256, 16
    $region17: #{tpu_custom_call.1} parent=1 // pred_fallthru
      _
    // Predicated region
    $region18: #{tpu_custom_call.1} parent=1 // pred_check
      _
    $region19: #{tpu_custom_call.1} parent=1 // pred_check_branch
      %50 = sbr.rel (0) target = $region21
    $region20: #{tpu_custom_call.1} parent=1 // pred_region
      _
    $region21: #{tpu_custom_call.1} parent=1 // pred_fallthru
      _
    // Predicated region
    $region22: #{tpu_custom_call.1} parent=1 // pred_check
      _
    $region23: #{tpu_custom_call.1} parent=1 // pred_check_branch
      %52 = sbr.rel (0) target = $region25
    $region24: #{tpu_custom_call.1} parent=1 // pred_region
      %53 = dma.done [#allocation3], 256
    $region25: #{tpu_custom_call.1} parent=1 // pred_fallthru
      _
    // Predicated region
    $region26: #{tpu_custom_call.1} parent=1 // pred_check
      _
    $region27: #{tpu_custom_call.1} parent=1 // pred_check_branch
      %55 = sbr.rel (0) target = $region29
    $region28: #{tpu_custom_call.1} parent=1 // pred_region
      %56 = dma.done [#allocation6], 4096
    $region29: #{tpu_custom_call.1} parent=1 // pred_fallthru
      _
    // Predicated region
    $region30: #{tpu_custom_call.1} parent=1 // pred_check
      _
    $region31: #{tpu_custom_call.1} parent=1 // pred_check_branch
      %58 = sbr.rel (0) target = $region33
    $region32: #{tpu_custom_call.1} parent=1 // pred_region
      %59 = dma.done [#allocation6], 4096
    $region33: #{tpu_custom_call.1} parent=1 // pred_fallthru
      _
    %v60 = vld [vmem:[#allocation2] sm:$0xff]
    %v61 = vld [vmem:[#allocation2 + $0x8] sm:$0xff]
    %v62 = vld [vmem:[#allocation5] sm:$0xff]
    %v63 = vld [vmem:[#allocation5 + $0x8] sm:$0xff]
    %v64 = vld [vmem:[#allocation5 + $0x10] sm:$0xff]
    %v65 = vld [vmem:[#allocation5 + $0x18] sm:$0xff]
    %v66 = vld [vmem:[#allocation5 + $0x20] sm:$0xff]
    %v67 = vld [vmem:[#allocation5 + $0x28] sm:$0xff]
    %v68 = vld [vmem:[#allocation5 + $0x30] sm:$0xff]
    %v69 = vld [vmem:[#allocation5 + $0x38] sm:$0xff]
    %v70 = vld [vmem:[#allocation5 + $0x40] sm:$0xff]
    %v71 = vld [vmem:[#allocation5 + $0x48] sm:$0xff]
    %v72 = vld [vmem:[#allocation5 + $0x50] sm:$0xff]
    %v73 = vld [vmem:[#allocation5 + $0x58] sm:$0xff]
    %v74 = vld [vmem:[#allocation5 + $0x60] sm:$0xff]
    %v75 = vld [vmem:[#allocation5 + $0x68] sm:$0xff]
    %v76 = vld [vmem:[#allocation5 + $0x70] sm:$0xff]
    %v77 = vld [vmem:[#allocation5 + $0x78] sm:$0xff]
    %v78 = vld [vmem:[#allocation5 + $0x80] sm:$0xff]
    %v79 = vld [vmem:[#allocation5 + $0x88] sm:$0xff]
    %v80 = vld [vmem:[#allocation5 + $0x90] sm:$0xff]
    %v81 = vld [vmem:[#allocation5 + $0x98] sm:$0xff]
    %v82 = vld [vmem:[#allocation5 + $0xa0] sm:$0xff]
    %v83 = vld [vmem:[#allocation5 + $0xa8] sm:$0xff]
    %v84 = vld [vmem:[#allocation5 + $0xb0] sm:$0xff]
    %v85 = vld [vmem:[#allocation5 + $0xb8] sm:$0xff]
    %v86 = vld [vmem:[#allocation5 + $0xc0] sm:$0xff]
    %v87 = vld [vmem:[#allocation5 + $0xc8] sm:$0xff]
    %v88 = vld [vmem:[#allocation5 + $0xd0] sm:$0xff]
    %v89 = vld [vmem:[#allocation5 + $0xd8] sm:$0xff]
    %v90 = vld [vmem:[#allocation5 + $0xe0] sm:$0xff]
    %v91 = vld [vmem:[#allocation5 + $0xe8] sm:$0xff]
    %v92 = vld [vmem:[#allocation5 + $0xf0] sm:$0xff]
    %v93 = vld [vmem:[#allocation5 + $0xf8] sm:$0xff]
    %v94 = vld [vmem:[%s2] sm:$0x1]
    %v96 = vlaneseq
    %v97 = vshrl.u32 %v96, 7
    %v98 = vsub.s32 0, %v97
    %v99 = vrot.slane %v94, %v98
    %101 = vmatprep.subr.mxu0 0.0
    %102 = vmatpush1.msra.mxu0 %v62
    %103 = vmatprep.subr.mxu0 0.0
    %104 = vmatpush1.msra.mxu0 %v63
    %105 = vmatprep.subr.mxu0 0.0
    %106 = vmatpush1.msra.mxu0 %v64
    %107 = vmatprep.subr.mxu0 0.0
    %108 = vmatpush1.msra.mxu0 %v65
    %109 = vmatprep.subr.mxu0 0.0
    %110 = vmatpush1.msra.mxu0 %v66
    %111 = vmatprep.subr.mxu0 0.0
    %112 = vmatpush1.msra.mxu0 %v67
    %113 = vmatprep.subr.mxu0 0.0
    %114 = vmatpush1.msra.mxu0 %v68
    %115 = vmatprep.subr.mxu0 0.0
    %116 = vmatpush1.msra.mxu0 %v69
    %117 = vmatprep.subr.mxu0 0.0
    %118 = vmatpush1.msra.mxu0 %v70
    %119 = vmatprep.subr.mxu0 0.0
    %120 = vmatpush1.msra.mxu0 %v71
    %121 = vmatprep.subr.mxu0 0.0
    %122 = vmatpush1.msra.mxu0 %v72
    %123 = vmatprep.subr.mxu0 0.0
    %124 = vmatpush1.msra.mxu0 %v73
    %125 = vmatprep.subr.mxu0 0.0
    %126 = vmatpush1.msra.mxu0 %v74
    %127 = vmatprep.subr.mxu0 0.0
    %128 = vmatpush1.msra.mxu0 %v75
    %129 = vmatprep.subr.mxu0 0.0
    %130 = vmatpush1.msra.mxu0 %v76
    %131 = vmatprep.subr.mxu0 0.0
    %132 = vmatpush1.msra.mxu0 %v77
    %133 = vmatprep.subr.mxu0 0.0
    %134 = vmatpush1.msra.mxu0 %v78
    %135 = vmatprep.subr.mxu0 0.0
    %136 = vmatpush1.msra.mxu0 %v79
    %137 = vmatprep.subr.mxu0 0.0
    %138 = vmatpush1.msra.mxu0 %v80
    %139 = vmatprep.subr.mxu0 0.0
    %140 = vmatpush1.msra.mxu0 %v81
    %141 = vmatprep.subr.mxu0 0.0
    %142 = vmatpush1.msra.mxu0 %v82
    %143 = vmatprep.subr.mxu0 0.0
    %144 = vmatpush1.msra.mxu0 %v83
    %145 = vmatprep.subr.mxu0 0.0
    %146 = vmatpush1.msra.mxu0 %v84
    %147 = vmatprep.subr.mxu0 0.0
    %148 = vmatpush1.msra.mxu0 %v85
    %149 = vmatprep.subr.mxu0 0.0
    %150 = vmatpush1.msra.mxu0 %v86
    %151 = vmatprep.subr.mxu0 0.0
    %152 = vmatpush1.msra.mxu0 %v87
    %153 = vmatprep.subr.mxu0 0.0
    %154 = vmatpush1.msra.mxu0 %v88
    %155 = vmatprep.subr.mxu0 0.0
    %156 = vmatpush1.msra.mxu0 %v89
    %157 = vmatprep.subr.mxu0 0.0
    %158 = vmatpush1.msra.mxu0 %v90
    %159 = vmatprep.subr.mxu0 0.0
    %160 = vmatpush1.msra.mxu0 %v91
    %161 = vmatprep.subr.mxu0 0.0
    %162 = vmatpush1.msra.mxu0 %v92
    %163 = vmatprep.subr.mxu0 0.0
    %164 = vmatpush1.msra.mxu0 %v93
    %165 = vmatprep.mubr.f32.mxu0 %v61
    %166 = vmatmul.mubr.f32.gmra.mrb[0].mxu0 %v60
    %v167 = vpop.f32.mrb[0].mxu0
    %v168 = vadd.f32 %v99, %v167
    %v169 = vpop.f32.mrb[0].mxu0
    %170 = vdwg.mxu0
    %v171 = vmax.f32 %v168, 0.0
    %v172 = vld [vmem:[#allocation7] sm:$0xff]
    %v173 = vld [vmem:[#allocation7 + $0x8] sm:$0xff]
    %v174 = vld [vmem:[#allocation7 + $0x10] sm:$0xff]
    %v175 = vld [vmem:[#allocation7 + $0x18] sm:$0xff]
    %v176 = vld [vmem:[#allocation7 + $0x20] sm:$0xff]
    %v177 = vld [vmem:[#allocation7 + $0x28] sm:$0xff]
    %v178 = vld [vmem:[#allocation7 + $0x30] sm:$0xff]
    %v179 = vld [vmem:[#allocation7 + $0x38] sm:$0xff]
    %v180 = vld [vmem:[#allocation7 + $0x40] sm:$0xff]
    %v181 = vld [vmem:[#allocation7 + $0x48] sm:$0xff]
    %v182 = vld [vmem:[#allocation7 + $0x50] sm:$0xff]
    %v183 = vld [vmem:[#allocation7 + $0x58] sm:$0xff]
    %v184 = vld [vmem:[#allocation7 + $0x60] sm:$0xff]
    %v185 = vld [vmem:[#allocation7 + $0x68] sm:$0xff]
    %v186 = vld [vmem:[#allocation7 + $0x70] sm:$0xff]
    %v187 = vld [vmem:[#allocation7 + $0x78] sm:$0xff]
    %v188 = vld [vmem:[#allocation7 + $0x80] sm:$0xff]
    %v189 = vld [vmem:[#allocation7 + $0x88] sm:$0xff]
    %v190 = vld [vmem:[#allocation7 + $0x90] sm:$0xff]
    %v191 = vld [vmem:[#allocation7 + $0x98] sm:$0xff]
    %v192 = vld [vmem:[#allocation7 + $0xa0] sm:$0xff]
    %v193 = vld [vmem:[#allocation7 + $0xa8] sm:$0xff]
    %v194 = vld [vmem:[#allocation7 + $0xb0] sm:$0xff]
    %v195 = vld [vmem:[#allocation7 + $0xb8] sm:$0xff]
    %v196 = vld [vmem:[#allocation7 + $0xc0] sm:$0xff]
    %v197 = vld [vmem:[#allocation7 + $0xc8] sm:$0xff]
    %v198 = vld [vmem:[#allocation7 + $0xd0] sm:$0xff]
    %v199 = vld [vmem:[#allocation7 + $0xd8] sm:$0xff]
    %v200 = vld [vmem:[#allocation7 + $0xe0] sm:$0xff]
    %v201 = vld [vmem:[#allocation7 + $0xe8] sm:$0xff]
    %v202 = vld [vmem:[#allocation7 + $0xf0] sm:$0xff]
    %v203 = vld [vmem:[#allocation7 + $0xf8] sm:$0xff]
    %v204 = vld [vmem:[%s4] sm:$0x3]
    %v206 = vlaneseq
    %v207 = vshrl.u32 %v206, 7
    %v208 = vsub.s32 0, %v207
    %v209 = vrot.slane %v204, %v208
    %v210 = vlaneseq
    %v211 = vshrl.u32 %v210, 7
    %v212 = vsub.s32 1, %v211
    %v213 = vrot.slane %v204, %v212
    %216 = vmatprep.subr.mxu0 %v173
    %217 = vmatpush1.msra.mxu0 %v172
    %218 = vmatprep.subr.mxu0 %v175
    %219 = vmatpush1.msra.mxu0 %v174
    %220 = vmatprep.subr.mxu0 %v177
    %221 = vmatpush1.msra.mxu0 %v176
    %222 = vmatprep.subr.mxu0 %v179
    %223 = vmatpush1.msra.mxu0 %v178
    %224 = vmatprep.subr.mxu0 %v181
    %225 = vmatpush1.msra.mxu0 %v180
    %226 = vmatprep.subr.mxu0 %v183
    %227 = vmatpush1.msra.mxu0 %v182
    %228 = vmatprep.subr.mxu0 %v185
    %229 = vmatpush1.msra.mxu0 %v184
    %230 = vmatprep.subr.mxu0 %v187
    %231 = vmatpush1.msra.mxu0 %v186
    %232 = vmatprep.subr.mxu0 %v189
    %233 = vmatpush1.msra.mxu0 %v188
    %234 = vmatprep.subr.mxu0 %v191
    %235 = vmatpush1.msra.mxu0 %v190
    %236 = vmatprep.subr.mxu0 %v193
    %237 = vmatpush1.msra.mxu0 %v192
    %238 = vmatprep.subr.mxu0 %v195
    %239 = vmatpush1.msra.mxu0 %v194
    %240 = vmatprep.subr.mxu0 %v197
    %241 = vmatpush1.msra.mxu0 %v196
    %242 = vmatprep.subr.mxu0 %v199
    %243 = vmatpush1.msra.mxu0 %v198
    %244 = vmatprep.subr.mxu0 %v201
    %245 = vmatpush1.msra.mxu0 %v200
    %246 = vmatprep.subr.mxu0 %v203
    %247 = vmatpush1.msra.mxu0 %v202
    %248 = vmatprep.subr.mxu0 0.0
    %249 = vmatpush1.msra.mxu0 0.0
    %250 = vmatprep.subr.mxu0 0.0
    %251 = vmatpush1.msra.mxu0 0.0
    %252 = vmatprep.subr.mxu0 0.0
    %253 = vmatpush1.msra.mxu0 0.0
    %254 = vmatprep.subr.mxu0 0.0
    %255 = vmatpush1.msra.mxu0 0.0
    %256 = vmatprep.subr.mxu0 0.0
    %257 = vmatpush1.msra.mxu0 0.0
    %258 = vmatprep.subr.mxu0 0.0
    %259 = vmatpush1.msra.mxu0 0.0
    %260 = vmatprep.subr.mxu0 0.0
    %261 = vmatpush1.msra.mxu0 0.0
    %262 = vmatprep.subr.mxu0 0.0
    %263 = vmatpush1.msra.mxu0 0.0
    %264 = vmatprep.subr.mxu0 0.0
    %265 = vmatpush1.msra.mxu0 0.0
    %266 = vmatprep.subr.mxu0 0.0
    %267 = vmatpush1.msra.mxu0 0.0
    %268 = vmatprep.subr.mxu0 0.0
    %269 = vmatpush1.msra.mxu0 0.0
    %270 = vmatprep.subr.mxu0 0.0
    %271 = vmatpush1.msra.mxu0 0.0
    %272 = vmatprep.subr.mxu0 0.0
    %273 = vmatpush1.msra.mxu0 0.0
    %274 = vmatprep.subr.mxu0 0.0
    %275 = vmatpush1.msra.mxu0 0.0
    %276 = vmatprep.subr.mxu0 0.0
    %277 = vmatpush1.msra.mxu0 0.0
    %278 = vmatprep.subr.mxu0 0.0
    %279 = vmatpush1.msra.mxu0 0.0
    %280 = vmatprep.mubr.f32.mxu0 0.0
    %281 = vmatmul.mubr.f32.gmra.mrb[0].mxu0 %v171
    %v282 = vpop.f32.mrb[0].mxu0
    %v283 = vadd.f32 %v209, %v282
    %v284 = vpop.f32.mrb[0].mxu0
    %v285 = vadd.f32 %v213, %v284
    %286 = vdwg.mxu0
    %v287 = vsub.f32 0.0, %v283
    %v288 = vsub.f32 0.0, %v285
    %v289 = vmul.f32 %v287, 1.442695
    %v290 = vpow.pop %v289
    %v291 = vmul.f32 %v288, 1.442695
    %v292 = vpow.pop %v291
    %v293 = vadd.f32 %v290, 1.0
    %v294 = vadd.f32 %v292, 1.0
    %v295 = vrcp.pop %v293
    %v296 = vrcp.pop %v294
    %297 = vst [vmem:[#allocation8] sm:$0xff] %v295
    %298 = vst [vmem:[#allocation8 + $0x8] sm:$0xff] %v296
    // Predicated region
    $region34: #{tpu_custom_call.1} parent=1 // pred_check
      _
    $region35: #{tpu_custom_call.1} parent=1 // pred_check_branch
      %300 = sbr.rel (0) target = $region37
    $region36: #{tpu_custom_call.1} parent=1 // pred_region
      %s302 = ssub.s32 256, 256
      %303 = vsyncadd [#allocation4], %s302
      %s305 = sshll.u32 [#allocation8], 4
      %s306 = int_to_ptr.vmem [resolvable:$true] %s305
      %308 = dma.vmem_to_hbm [thread:$0]  %s306, 256, %s5, [#allocation4]
    $region37: #{tpu_custom_call.1} parent=1 // pred_fallthru
      _
    // Predicated region
    $region38: #{tpu_custom_call.1} parent=1 // pred_check
      _
    $region39: #{tpu_custom_call.1} parent=1 // pred_check_branch
      %310 = sbr.rel (0) target = $region41
    $region40: #{tpu_custom_call.1} parent=1 // pred_region
      %311 = dma.done [#allocation4], 256
    $region41: #{tpu_custom_call.1} parent=1 // pred_fallthru
      _
    %312 = vsyncpa [#allocation3], 1
    %313 = vsyncpa [#allocation6], 1
    %314 = vsyncpa [#allocation4], 1

</llo_original>
